<compile_context>
chip_gen: v5e
topology: v5e:2x2
jax: 0.10.0
libtpu: 0.0.40
codegen_flags: <defaults>
</compile_context>

<pallas_src>
import functools

import jax
import jax.numpy as jnp
import numpy as np
from jax import lax
from jax.experimental import pallas as pl
from jax.experimental.pallas import tpu as pltpu


def _mhsa_kernel(x_ref, wqkv_ref, bqkv_ref, wo_ref, bo_ref, o_ref,
                 kv_ref, ctx_ref, *, num_heads, inv_scale):
    _, S, E = x_ref.shape
    _, TQ, _ = o_ref.shape
    H = num_heads
    D = E // H
    qi = pl.program_id(1)

    # ---- K/V projection: computed ONCE per batch (qi == 0) into a bf16 VMEM
    # scratch that persists across the sequential ("arbitrary") query-tile axis.
    @pl.when(qi == 0)
    def _():
        x_full = x_ref[0]                                        # (S, E) bf16
        kv = jnp.dot(x_full, wqkv_ref[:, E:],
                     preferred_element_type=jnp.float32) + bqkv_ref[:, E:]
        kv_ref[...] = kv.astype(jnp.bfloat16)                    # (S, 2E) bf16

    # ---- Q projection for this query tile only, sliced from the resident x block
    # (no second / duplicated x input, no extra HBM traffic).
    q_start = pl.multiple_of(qi * TQ, TQ)
    xq = x_ref[0, pl.ds(q_start, TQ), :]                         # (TQ, E) bf16
    q = jnp.dot(xq, wqkv_ref[:, :E],
                preferred_element_type=jnp.float32) + bqkv_ref[:, :E]
    # Fold 1/sqrt(D) into q once; single whole-array bf16 cast (not per head).
    q = (q * inv_scale).astype(jnp.bfloat16)                     # (TQ, E) bf16

    k = kv_ref[:, :E]                                            # (S, E) bf16
    v = kv_ref[:, E:]                                            # (S, E) bf16

    # ---- Per-head attention. Each head's context is written at lane offset h*D
    # of a (TQ, E) bf16 scratch so the output projection becomes ONE
    # contraction-E GEMM instead of H shallow contraction-D GEMMs.
    for h in range(H):
        sl = slice(h * D, (h + 1) * D)
        # energy (TQ, S): contraction over D (scale already folded into q).
        e = lax.dot_general(q[:, sl], k[:, sl], (((1,), (1,)), ((), ())),
                            preferred_element_type=jnp.float32)
        # numerically stable softmax statistics in f32
        m = jnp.max(e, axis=-1, keepdims=True)
        p = jnp.exp(e - m)
        l = jnp.sum(p, axis=-1, keepdims=True)
        # Deferred normalization: PV with unnormalized p, rescale the (TQ, D)
        # result (S/D fewer multiplies than normalizing the (TQ, S) probs).
        oh = jnp.dot(p.astype(jnp.bfloat16), v[:, sl],
                     preferred_element_type=jnp.float32)          # (TQ, D) f32
        oh = oh * pl.reciprocal(l, approx=True)
        ctx_ref[:, sl] = oh.astype(jnp.bfloat16)

    # ---- Single fused output projection: (TQ, E) x (E, E) + bias.
    y = jnp.dot(ctx_ref[...], wo_ref[...],
                preferred_element_type=jnp.float32) + bo_ref[...]
    o_ref[0] = y.astype(o_ref.dtype)


def mhsa_pallas(x, params, num_heads, *, q_tile=None, out_dtype=None):
    """x: (B, S, E) float32.  params: dict of (in,out) f32 weights and (1,E) biases."""
    B, S, E = x.shape
    assert E % num_heads == 0
    D = E // num_heads
    inv_scale = 1.0 / float(np.sqrt(D))
    out_dtype = x.dtype if out_dtype is None else out_dtype
    out_bytes = jnp.dtype(out_dtype).itemsize

    if q_tile is None:
        q_tile = S
        for t in (512, 256, 128, 64, 32, 16):
            if S % t == 0:
                q_tile = t
                break
    # TODO(synk): pad-and-mask S to a multiple of q_tile for real ViT sequence
    # lengths (197/577) instead of falling back to a single untiled block.
    assert S % q_tile == 0
    nq = S // q_tile

    # Fused QKV weights; MXU operands in bf16, biases stay f32.
    w_qkv = jnp.concatenate([params["wq"], params["wk"], params["wv"]],
                            axis=1).astype(jnp.bfloat16)          # (E, 3E)
    b_qkv = jnp.concatenate([params["bq"], params["bk"], params["bv"]],
                            axis=1).astype(jnp.float32)           # (1, 3E)
    wo = params["wo"].astype(jnp.bfloat16)
    bo = params["bo"].astype(jnp.float32)
    x_bf = x.astype(jnp.bfloat16)

    kernel = functools.partial(_mhsa_kernel, num_heads=num_heads,
                               inv_scale=inv_scale)

    # Whole-array VMEM residents: single-buffered, never re-DMA'd per grid step.
    resident = pl.BlockSpec(memory_space=pltpu.MemorySpace.VMEM)

    # Advisory cost estimate (K/V projection counted once per batch).
    flops = int(B * (8 * S * E * E + 4 * S * S * E))
    transcendentals = int(B * num_heads * S * S)
    bytes_accessed = int(B * S * E * 2 + B * S * E * out_bytes
                         + 4 * E * E * 2 + 4 * E * 4)
    cost = pl.CostEstimate(flops=flops, transcendentals=transcendentals,
                           bytes_accessed=bytes_accessed)

    # VMEM budget: resident weights + double-buffered x / out blocks + scratch
    # (bf16 K/V cache, bf16 context slab) + transient f32 intermediates.
    # Capped at 56 MiB so v7x (64 MiB/TC) keeps compiler-scratch headroom; floor
    # of 32 MiB so v5e/v6e (128 MiB) are not needlessly constrained.
    weight_vmem = 4 * E * E * 2 + 4 * E * 4
    io_vmem = 2 * S * E * 2 + 2 * q_tile * E * out_bytes
    scratch_vmem = S * 2 * E * 2 + q_tile * E * 2
    act_vmem = (2 * S * E + 2 * q_tile * E + 2 * q_tile * S) * 4
    vmem_limit = int(min(56 * 2**20,
                         max(32 * 2**20,
                             2 * (weight_vmem + io_vmem + scratch_vmem + act_vmem))))

    return pl.pallas_call(
        kernel,
        out_shape=jax.ShapeDtypeStruct((B, S, E), out_dtype),
        grid_spec=pltpu.PrefetchScalarGridSpec(
            num_scalar_prefetch=0,
            grid=(B, nq),                       # B outermost, query tiles innermost
            in_specs=[
                pl.BlockSpec((1, S, E), lambda b, qi: (b, 0, 0)),  # x (full seq, once)
                resident,   # W_qkv (E, 3E)
                resident,   # b_qkv (1, 3E)
                resident,   # W_o   (E, E)
                resident,   # b_o   (1, E)
            ],
            out_specs=pl.BlockSpec((1, q_tile, E), lambda b, qi: (b, qi, 0)),
            scratch_shapes=[
                pltpu.VMEM((S, 2 * E), jnp.bfloat16),    # per-batch K/V cache
                pltpu.VMEM((q_tile, E), jnp.bfloat16),   # per-head context slab
            ],
        ),
        compiler_params=pltpu.CompilerParams(
            # B "parallel" (megacore shards batches on v7x); the query-tile axis
            # must be "arbitrary" because the K/V scratch is carried across it.
            dimension_semantics=("parallel", "arbitrary"),
            vmem_limit_bytes=vmem_limit),
        cost_estimate=cost,
    )(x_bf, w_qkv, b_qkv, wo, bo)


def mhsa_reference(x, params, num_heads):
    """Pure-JAX f32 reference mirroring the PyTorch forward exactly."""
    B, S, E = x.shape
    D = E // num_heads
    scale = np.sqrt(D)

    def lin(x, w, b):
        return x @ w + b

    q = lin(x, params["wq"], params["bq"]).reshape(B, S, num_heads, D)
    k = lin(x, params["wk"], params["bk"]).reshape(B, S, num_heads, D)
    v = lin(x, params["wv"], params["bv"]).reshape(B, S, num_heads, D)
    q = jnp.transpose(q, (0, 2, 1, 3))
    k = jnp.transpose(k, (0, 2, 1, 3))
    v = jnp.transpose(v, (0, 2, 1, 3))
    energy = jnp.einsum('bhqd,bhkd->bhqk', q, k) / scale
    attn = jax.nn.softmax(energy, axis=-1)
    out = jnp.einsum('bhqk,bhkd->bhqd', attn, v)
    out = jnp.transpose(out, (0, 2, 1, 3)).reshape(B, S, E)
    return lin(out, params["wo"], params["bo"])


def init_params(key, emb_size):
    """Deterministic init. Weights stored as (in,out) (transposed relative to
    PyTorch's (out,in) Linear.weight), biases as (1, E)."""
    ks = jax.random.split(key, 8)
    s = 1.0 / np.sqrt(emb_size)
    def w(k):
        return jax.random.uniform(k, (emb_size, emb_size), jnp.float32, -s, s)
    def b(k):
        return jax.random.uniform(k, (1, emb_size), jnp.float32, -s, s)
    return {
        "wq": w(ks[0]), "bq": b(ks[1]),
        "wk": w(ks[2]), "bk": b(ks[3]),
        "wv": w(ks[4]), "bv": b(ks[5]),
        "wo": w(ks[6]), "bo": b(ks[7]),
    }


if __name__ == "__main__":
    key = jax.random.PRNGKey(0)
    kx1, kx2, kp = jax.random.split(key, 3)

    # Config 1: toy ViT sizes, single query tile (nq == 1) path.
    B, S, E, H = 2, 8, 32, 4           # head_dim = 8
    x = jax.random.normal(kx1, (B, S, E), dtype=jnp.float32)
    params = init_params(kp, E)

    out = jax.block_until_ready(mhsa_pallas(x, params, num_heads=H))
    ref = mhsa_reference(x, params, num_heads=H)
    np.testing.assert_allclose(np.asarray(out), np.asarray(ref),
                               rtol=2e-2, atol=2e-2)   # bf16 MXU + approx reciprocal

    # Config 2: longer sequence, exercises the tiled-qi path with the per-batch
    # K/V VMEM cache (qi axis "arbitrary", scratch carried across tiles).
    S2 = 32
    x2 = jax.random.normal(kx2, (B, S2, E), dtype=jnp.float32)
    out2 = jax.block_until_ready(mhsa_pallas(x2, params, num_heads=H, q_tile=16))
    ref2 = mhsa_reference(x2, params, num_heads=H)
    np.testing.assert_allclose(np.asarray(out2), np.asarray(ref2),
                               rtol=2e-2, atol=2e-2)

    print("KERNEL_OK")
</pallas_src>

<mosaic_0001>
module attributes {stable_mosaic.version = 11 : i64} {
  func.func @_mhsa_kernel(%arg0: i32, %arg1: i32, %arg2: memref<1x8x32xbf16, #tpu.memory_space<vmem>>, %arg3: memref<32x96xbf16, #tpu.memory_space<vmem>>, %arg4: memref<1x96xf32, #tpu.memory_space<vmem>>, %arg5: memref<32x32xbf16, #tpu.memory_space<vmem>>, %arg6: memref<1x32xf32, #tpu.memory_space<vmem>>, %arg7: memref<1x8x32xf32, #tpu.memory_space<vmem>>, %arg8: memref<8x64xbf16, #tpu.memory_space<vmem>>, %arg9: memref<8x32xbf16, #tpu.memory_space<vmem>>) attributes {dimension_semantics = [#tpu.dimension_semantics<parallel>, #tpu.dimension_semantics<arbitrary>], iteration_bounds = array<i64: 2, 1>, scalar_prefetch = 0 : i64, scratch_operands = 2 : i64, tpu.core_type = #tpu.core_type<tc>, window_params = [{transform_indices = @transform_0, window_bounds = array<i64: 1, 8, 32>}, {pipeline_mode = #tpu.pipeline_mode<synchronous>, transform_indices = @transform_1, window_bounds = array<i64: 32, 96>}, {pipeline_mode = #tpu.pipeline_mode<synchronous>, transform_indices = @transform_2, window_bounds = array<i64: 1, 96>}, {pipeline_mode = #tpu.pipeline_mode<synchronous>, transform_indices = @transform_3, window_bounds = array<i64: 32, 32>}, {pipeline_mode = #tpu.pipeline_mode<synchronous>, transform_indices = @transform_4, window_bounds = array<i64: 1, 32>}, {transform_indices = @transform_5, window_bounds = array<i64: 1, 8, 32>}]} {
    %c0_i32 = arith.constant 0 : i32
    %0 = arith.cmpi eq, %arg1, %c0_i32 : i32
    %1 = arith.extui %0 : i1 to i32
    %c0_i32_0 = arith.constant 0 : i32
    %2 = arith.cmpi ne, %1, %c0_i32_0 : i32
    scf.if %2 {
      %c0_41 = arith.constant 0 : index
      %c0_42 = arith.constant 0 : index
      %c0_43 = arith.constant 0 : index
      %99 = vector.load %arg2[%c0_41, %c0_42, %c0_43] : memref<1x8x32xbf16, #tpu.memory_space<vmem>>, vector<1x8x32xbf16>
      %100 = vector.shape_cast %99 : vector<1x8x32xbf16> to vector<8x32xbf16>
      %c0_44 = arith.constant 0 : index
      %c32_45 = arith.constant 32 : index
      %101 = vector.load %arg3[%c0_44, %c32_45] : memref<32x96xbf16, #tpu.memory_space<vmem>>, vector<32x64xbf16>
      %cst_46 = arith.constant dense<0.000000e+00> : vector<8x64xf32>
      %102 = tpu.matmul %100, %101, %cst_46 {dimension_numbers = #tpu.dot_dimension_numbers<[1], [0], [0], [1], [0, 0, 1, 1], [], []>} : vector<8x32xbf16>, vector<32x64xbf16>, vector<8x64xf32> -> vector<8x64xf32>
      %c0_47 = arith.constant 0 : index
      %c32_48 = arith.constant 32 : index
      %103 = vector.load %arg4[%c0_47, %c32_48] : memref<1x96xf32, #tpu.memory_space<vmem>>, vector<1x64xf32>
      %104 = vector.broadcast %103 : vector<1x64xf32> to vector<8x64xf32>
      %105 = arith.addf %102, %104 : vector<8x64xf32>
      %106 = arith.truncf %105 : vector<8x64xf32> to vector<8x64xbf16>
      %c0_49 = arith.constant 0 : index
      %c0_50 = arith.constant 0 : index
      %107 = vector.load %arg8[%c0_49, %c0_50] : memref<8x64xbf16, #tpu.memory_space<vmem>>, vector<8x64xbf16>
      tpu.vector_store %arg8[%c0_49, %c0_50], %106 {strides = array<i32>} : memref<8x64xbf16, #tpu.memory_space<vmem>>, vector<8x64xbf16>,
    } else {
    }
    %c8_i32 = arith.constant 8 : i32
    %3 = arith.muli %arg1, %c8_i32 : i32
    %4 = tpu.assume_multiple %3, 8 : i32
    %c0 = arith.constant 0 : index
    %5 = arith.index_cast %4 : i32 to index
    %c0_1 = arith.constant 0 : index
    %6 = vector.load %arg2[%c0, %5, %c0_1] : memref<1x8x32xbf16, #tpu.memory_space<vmem>>, vector<1x8x32xbf16>
    %7 = vector.shape_cast %6 : vector<1x8x32xbf16> to vector<8x32xbf16>
    %c0_2 = arith.constant 0 : index
    %c0_3 = arith.constant 0 : index
    %8 = vector.load %arg3[%c0_2, %c0_3] : memref<32x96xbf16, #tpu.memory_space<vmem>>, vector<32x32xbf16>
    %cst = arith.constant dense<0.000000e+00> : vector<8x32xf32>
    %9 = tpu.matmul %7, %8, %cst {dimension_numbers = #tpu.dot_dimension_numbers<[1], [0], [0], [1], [0, 0, 1, 1], [], []>} : vector<8x32xbf16>, vector<32x32xbf16>, vector<8x32xf32> -> vector<8x32xf32>
    %c0_4 = arith.constant 0 : index
    %c0_5 = arith.constant 0 : index
    %10 = vector.load %arg4[%c0_4, %c0_5] : memref<1x96xf32, #tpu.memory_space<vmem>>, vector<1x32xf32>
    %11 = vector.broadcast %10 : vector<1x32xf32> to vector<8x32xf32>
    %12 = arith.addf %9, %11 : vector<8x32xf32>
    %cst_6 = arith.constant 0.353553385 : f32
    %13 = vector.broadcast %cst_6 : f32 to vector<8x32xf32>
    %14 = arith.mulf %12, %13 : vector<8x32xf32>
    %15 = arith.truncf %14 : vector<8x32xf32> to vector<8x32xbf16>
    %c0_7 = arith.constant 0 : index
    %c0_8 = arith.constant 0 : index
    %16 = vector.load %arg8[%c0_7, %c0_8] : memref<8x64xbf16, #tpu.memory_space<vmem>>, vector<8x32xbf16>
    %c0_9 = arith.constant 0 : index
    %c32 = arith.constant 32 : index
    %17 = vector.load %arg8[%c0_9, %c32] : memref<8x64xbf16, #tpu.memory_space<vmem>>, vector<8x32xbf16>
    %18 = vector.extract_strided_slice %15 {offsets = [0, 0], sizes = [8, 8], strides = [1, 1]} : vector<8x32xbf16> to vector<8x8xbf16>
    %19 = vector.extract_strided_slice %16 {offsets = [0, 0], sizes = [8, 8], strides = [1, 1]} : vector<8x32xbf16> to vector<8x8xbf16>
    %cst_10 = arith.constant dense<0.000000e+00> : vector<8x8xf32>
    %20 = tpu.matmul %18, %19, %cst_10 {dimension_numbers = #tpu.dot_dimension_numbers<[1], [1], [0], [0], [0, 0, 1, 0], [], []>} : vector<8x8xbf16>, vector<8x8xbf16>, vector<8x8xf32> -> vector<8x8xf32>
    %cst_11 = arith.constant dense<0xFF800000> : vector<8xf32>
    %21 = vector.multi_reduction <maximumf>, %20, %cst_11 [1] : vector<8x8xf32> to vector<8xf32>
    %22 = vector.shape_cast %21 : vector<8xf32> to vector<8x1xf32>
    %23 = vector.broadcast %22 : vector<8x1xf32> to vector<8x8xf32>
    %24 = arith.subf %20, %23 : vector<8x8xf32>
    %25 = math.exp %24 : vector<8x8xf32>
    %cst_12 = arith.constant dense<0.000000e+00> : vector<8xf32>
    %26 = vector.multi_reduction <add>, %25, %cst_12 [1] : vector<8x8xf32> to vector<8xf32>
    %27 = vector.shape_cast %26 : vector<8xf32> to vector<8x1xf32>
    %28 = arith.truncf %25 : vector<8x8xf32> to vector<8x8xbf16>
    %29 = vector.extract_strided_slice %17 {offsets = [0, 0], sizes = [8, 8], strides = [1, 1]} : vector<8x32xbf16> to vector<8x8xbf16>
    %cst_13 = arith.constant dense<0.000000e+00> : vector<8x8xf32>
    %30 = tpu.matmul %28, %29, %cst_13 {dimension_numbers = #tpu.dot_dimension_numbers<[1], [0], [0], [1], [0, 0, 1, 1], [], []>} : vector<8x8xbf16>, vector<8x8xbf16>, vector<8x8xf32> -> vector<8x8xf32>
    %31 = tpu.reciprocal %27 {approx = true} : vector<8x1xf32> -> vector<8x1xf32>
    %32 = vector.broadcast %31 : vector<8x1xf32> to vector<8x8xf32>
    %33 = arith.mulf %30, %32 : vector<8x8xf32>
    %34 = arith.truncf %33 : vector<8x8xf32> to vector<8x8xbf16>
    %c0_14 = arith.constant 0 : index
    %c0_15 = arith.constant 0 : index
    %35 = vector.load %arg9[%c0_14, %c0_15] : memref<8x32xbf16, #tpu.memory_space<vmem>>, vector<8x8xbf16>
    tpu.vector_store %arg9[%c0_14, %c0_15], %34 {strides = array<i32>} : memref<8x32xbf16, #tpu.memory_space<vmem>>, vector<8x8xbf16>,
    %36 = vector.extract_strided_slice %15 {offsets = [0, 8], sizes = [8, 8], strides = [1, 1]} : vector<8x32xbf16> to vector<8x8xbf16>
    %37 = vector.extract_strided_slice %16 {offsets = [0, 8], sizes = [8, 8], strides = [1, 1]} : vector<8x32xbf16> to vector<8x8xbf16>
    %cst_16 = arith.constant dense<0.000000e+00> : vector<8x8xf32>
    %38 = tpu.matmul %36, %37, %cst_16 {dimension_numbers = #tpu.dot_dimension_numbers<[1], [1], [0], [0], [0, 0, 1, 0], [], []>} : vector<8x8xbf16>, vector<8x8xbf16>, vector<8x8xf32> -> vector<8x8xf32>
    %cst_17 = arith.constant dense<0xFF800000> : vector<8xf32>
    %39 = vector.multi_reduction <maximumf>, %38, %cst_17 [1] : vector<8x8xf32> to vector<8xf32>
    %40 = vector.shape_cast %39 : vector<8xf32> to vector<8x1xf32>
    %41 = vector.broadcast %40 : vector<8x1xf32> to vector<8x8xf32>
    %42 = arith.subf %38, %41 : vector<8x8xf32>
    %43 = math.exp %42 : vector<8x8xf32>
    %cst_18 = arith.constant dense<0.000000e+00> : vector<8xf32>
    %44 = vector.multi_reduction <add>, %43, %cst_18 [1] : vector<8x8xf32> to vector<8xf32>
    %45 = vector.shape_cast %44 : vector<8xf32> to vector<8x1xf32>
    %46 = arith.truncf %43 : vector<8x8xf32> to vector<8x8xbf16>
    %47 = vector.extract_strided_slice %17 {offsets = [0, 8], sizes = [8, 8], strides = [1, 1]} : vector<8x32xbf16> to vector<8x8xbf16>
    %cst_19 = arith.constant dense<0.000000e+00> : vector<8x8xf32>
    %48 = tpu.matmul %46, %47, %cst_19 {dimension_numbers = #tpu.dot_dimension_numbers<[1], [0], [0], [1], [0, 0, 1, 1], [], []>} : vector<8x8xbf16>, vector<8x8xbf16>, vector<8x8xf32> -> vector<8x8xf32>
    %49 = tpu.reciprocal %45 {approx = true} : vector<8x1xf32> -> vector<8x1xf32>
    %50 = vector.broadcast %49 : vector<8x1xf32> to vector<8x8xf32>
    %51 = arith.mulf %48, %50 : vector<8x8xf32>
    %52 = arith.truncf %51 : vector<8x8xf32> to vector<8x8xbf16>
    %c0_20 = arith.constant 0 : index
    %c8 = arith.constant 8 : index
    %53 = vector.load %arg9[%c0_20, %c8] : memref<8x32xbf16, #tpu.memory_space<vmem>>, vector<8x8xbf16>
    tpu.vector_store %arg9[%c0_20, %c8], %52 {strides = array<i32>} : memref<8x32xbf16, #tpu.memory_space<vmem>>, vector<8x8xbf16>,
    %54 = vector.extract_strided_slice %15 {offsets = [0, 16], sizes = [8, 8], strides = [1, 1]} : vector<8x32xbf16> to vector<8x8xbf16>
    %55 = vector.extract_strided_slice %16 {offsets = [0, 16], sizes = [8, 8], strides = [1, 1]} : vector<8x32xbf16> to vector<8x8xbf16>
    %cst_21 = arith.constant dense<0.000000e+00> : vector<8x8xf32>
    %56 = tpu.matmul %54, %55, %cst_21 {dimension_numbers = #tpu.dot_dimension_numbers<[1], [1], [0], [0], [0, 0, 1, 0], [], []>} : vector<8x8xbf16>, vector<8x8xbf16>, vector<8x8xf32> -> vector<8x8xf32>
    %cst_22 = arith.constant dense<0xFF800000> : vector<8xf32>
    %57 = vector.multi_reduction <maximumf>, %56, %cst_22 [1] : vector<8x8xf32> to vector<8xf32>
    %58 = vector.shape_cast %57 : vector<8xf32> to vector<8x1xf32>
    %59 = vector.broadcast %58 : vector<8x1xf32> to vector<8x8xf32>
    %60 = arith.subf %56, %59 : vector<8x8xf32>
    %61 = math.exp %60 : vector<8x8xf32>
    %cst_23 = arith.constant dense<0.000000e+00> : vector<8xf32>
    %62 = vector.multi_reduction <add>, %61, %cst_23 [1] : vector<8x8xf32> to vector<8xf32>
    %63 = vector.shape_cast %62 : vector<8xf32> to vector<8x1xf32>
    %64 = arith.truncf %61 : vector<8x8xf32> to vector<8x8xbf16>
    %65 = vector.extract_strided_slice %17 {offsets = [0, 16], sizes = [8, 8], strides = [1, 1]} : vector<8x32xbf16> to vector<8x8xbf16>
    %cst_24 = arith.constant dense<0.000000e+00> : vector<8x8xf32>
    %66 = tpu.matmul %64, %65, %cst_24 {dimension_numbers = #tpu.dot_dimension_numbers<[1], [0], [0], [1], [0, 0, 1, 1], [], []>} : vector<8x8xbf16>, vector<8x8xbf16>, vector<8x8xf32> -> vector<8x8xf32>
    %67 = tpu.reciprocal %63 {approx = true} : vector<8x1xf32> -> vector<8x1xf32>
    %68 = vector.broadcast %67 : vector<8x1xf32> to vector<8x8xf32>
    %69 = arith.mulf %66, %68 : vector<8x8xf32>
    %70 = arith.truncf %69 : vector<8x8xf32> to vector<8x8xbf16>
    %c0_25 = arith.constant 0 : index
    %c16 = arith.constant 16 : index
    %71 = vector.load %arg9[%c0_25, %c16] : memref<8x32xbf16, #tpu.memory_space<vmem>>, vector<8x8xbf16>
    tpu.vector_store %arg9[%c0_25, %c16], %70 {strides = array<i32>} : memref<8x32xbf16, #tpu.memory_space<vmem>>, vector<8x8xbf16>,
    %72 = vector.extract_strided_slice %15 {offsets = [0, 24], sizes = [8, 8], strides = [1, 1]} : vector<8x32xbf16> to vector<8x8xbf16>
    %73 = vector.extract_strided_slice %16 {offsets = [0, 24], sizes = [8, 8], strides = [1, 1]} : vector<8x32xbf16> to vector<8x8xbf16>
    %cst_26 = arith.constant dense<0.000000e+00> : vector<8x8xf32>
    %74 = tpu.matmul %72, %73, %cst_26 {dimension_numbers = #tpu.dot_dimension_numbers<[1], [1], [0], [0], [0, 0, 1, 0], [], []>} : vector<8x8xbf16>, vector<8x8xbf16>, vector<8x8xf32> -> vector<8x8xf32>
    %cst_27 = arith.constant dense<0xFF800000> : vector<8xf32>
    %75 = vector.multi_reduction <maximumf>, %74, %cst_27 [1] : vector<8x8xf32> to vector<8xf32>
    %76 = vector.shape_cast %75 : vector<8xf32> to vector<8x1xf32>
    %77 = vector.broadcast %76 : vector<8x1xf32> to vector<8x8xf32>
    %78 = arith.subf %74, %77 : vector<8x8xf32>
    %79 = math.exp %78 : vector<8x8xf32>
    %cst_28 = arith.constant dense<0.000000e+00> : vector<8xf32>
    %80 = vector.multi_reduction <add>, %79, %cst_28 [1] : vector<8x8xf32> to vector<8xf32>
    %81 = vector.shape_cast %80 : vector<8xf32> to vector<8x1xf32>
    %82 = arith.truncf %79 : vector<8x8xf32> to vector<8x8xbf16>
    %83 = vector.extract_strided_slice %17 {offsets = [0, 24], sizes = [8, 8], strides = [1, 1]} : vector<8x32xbf16> to vector<8x8xbf16>
    %cst_29 = arith.constant dense<0.000000e+00> : vector<8x8xf32>
    %84 = tpu.matmul %82, %83, %cst_29 {dimension_numbers = #tpu.dot_dimension_numbers<[1], [0], [0], [1], [0, 0, 1, 1], [], []>} : vector<8x8xbf16>, vector<8x8xbf16>, vector<8x8xf32> -> vector<8x8xf32>
    %85 = tpu.reciprocal %81 {approx = true} : vector<8x1xf32> -> vector<8x1xf32>
    %86 = vector.broadcast %85 : vector<8x1xf32> to vector<8x8xf32>
    %87 = arith.mulf %84, %86 : vector<8x8xf32>
    %88 = arith.truncf %87 : vector<8x8xf32> to vector<8x8xbf16>
    %c0_30 = arith.constant 0 : index
    %c24 = arith.constant 24 : index
    %89 = vector.load %arg9[%c0_30, %c24] : memref<8x32xbf16, #tpu.memory_space<vmem>>, vector<8x8xbf16>
    tpu.vector_store %arg9[%c0_30, %c24], %88 {strides = array<i32>} : memref<8x32xbf16, #tpu.memory_space<vmem>>, vector<8x8xbf16>,
    %c0_31 = arith.constant 0 : index
    %c0_32 = arith.constant 0 : index
    %90 = vector.load %arg9[%c0_31, %c0_32] : memref<8x32xbf16, #tpu.memory_space<vmem>>, vector<8x32xbf16>
    %c0_33 = arith.constant 0 : index
    %c0_34 = arith.constant 0 : index
    %91 = vector.load %arg5[%c0_33, %c0_34] : memref<32x32xbf16, #tpu.memory_space<vmem>>, vector<32x32xbf16>
    %cst_35 = arith.constant dense<0.000000e+00> : vector<8x32xf32>
    %92 = tpu.matmul %90, %91, %cst_35 {dimension_numbers = #tpu.dot_dimension_numbers<[1], [0], [0], [1], [0, 0, 1, 1], [], []>} : vector<8x32xbf16>, vector<32x32xbf16>, vector<8x32xf32> -> vector<8x32xf32>
    %c0_36 = arith.constant 0 : index
    %c0_37 = arith.constant 0 : index
    %93 = vector.load %arg6[%c0_36, %c0_37] : memref<1x32xf32, #tpu.memory_space<vmem>>, vector<1x32xf32>
    %94 = vector.broadcast %93 : vector<1x32xf32> to vector<8x32xf32>
    %95 = arith.addf %92, %94 : vector<8x32xf32>
    %c0_38 = arith.constant 0 : index
    %c0_39 = arith.constant 0 : index
    %c0_40 = arith.constant 0 : index
    %96 = vector.load %arg7[%c0_38, %c0_39, %c0_40] : memref<1x8x32xf32, #tpu.memory_space<vmem>>, vector<1x8x32xf32>
    %97 = vector.shape_cast %96 : vector<1x8x32xf32> to vector<8x32xf32>
    %98 = vector.shape_cast %95 : vector<8x32xf32> to vector<1x8x32xf32>
    tpu.vector_store %arg7[%c0_38, %c0_39, %c0_40], %98 {strides = array<i32>} : memref<1x8x32xf32, #tpu.memory_space<vmem>>, vector<1x8x32xf32>,
    return
  }
  func.func @transform_0(%arg0: i32, %arg1: i32) -> (i32, i32, i32) {
    %c0_i32 = arith.constant 0 : i32
    %c0_i32_0 = arith.constant 0 : i32
    %c0_i32_1 = arith.constant 0 : i32
    return %arg0, %c0_i32, %c0_i32_0 : i32, i32, i32
  }
  func.func @transform_1(%arg0: i32, %arg1: i32) -> (i32, i32) {
    %c0_i32 = arith.constant 0 : i32
    %c0_i32_0 = arith.constant 0 : i32
    %c0_i32_1 = arith.constant 0 : i32
    return %c0_i32, %c0_i32_0 : i32, i32
  }
  func.func @transform_2(%arg0: i32, %arg1: i32) -> (i32, i32) {
    %c0_i32 = arith.constant 0 : i32
    %c0_i32_0 = arith.constant 0 : i32
    %c0_i32_1 = arith.constant 0 : i32
    return %c0_i32, %c0_i32_0 : i32, i32
  }
  func.func @transform_3(%arg0: i32, %arg1: i32) -> (i32, i32) {
    %c0_i32 = arith.constant 0 : i32
    %c0_i32_0 = arith.constant 0 : i32
    %c0_i32_1 = arith.constant 0 : i32
    return %c0_i32, %c0_i32_0 : i32, i32
  }
  func.func @transform_4(%arg0: i32, %arg1: i32) -> (i32, i32) {
    %c0_i32 = arith.constant 0 : i32
    %c0_i32_0 = arith.constant 0 : i32
    %c0_i32_1 = arith.constant 0 : i32
    return %c0_i32, %c0_i32_0 : i32, i32
  }
  func.func @transform_5(%arg0: i32, %arg1: i32) -> (i32, i32, i32) {
    %c0_i32 = arith.constant 0 : i32
    %c0_i32_0 = arith.constant 0 : i32
    return %arg0, %arg1, %c0_i32 : i32, i32, i32
  }
}

</mosaic_0001>

<llo_original>
// kernel: tpu_custom_call.1
$region0: #{tpu_custom_call.1}
  #allocation0 [shape = 'u32[]', space=smem, size = 0x4, offset = 0x4, fixed_abs, tag = 'smem constant byte address 0x4 - core index']
  #allocation1 [shape = 'u32[72,128]{1,0:T(1,128)}', space=vmem, size = 0x9000, scoped, tag = 'internal scratch']
  #allocation2 [shape = 'bf16[8,64]{1,0:T(8,128)(2,1)}', space=vmem, size = 0x800, scoped, tag = 'scratch operand']
  #allocation3 [shape = 'bf16[8,32]{1,0:T(8,128)(2,1)}', space=vmem, size = 0x800, scoped, tag = 'scratch operand']
  %s0 = inlined_call_operand.hbm [shape: bf16[2,8,32], index: 0, kind: input, shape index: {}]
  %s1 = inlined_call_operand.hbm [shape: bf16[32,96], index: 1, kind: input, shape index: {}]
  %s2 = inlined_call_operand.vmem [shape: f32[1,96], index: 2, kind: input, shape index: {}]
  %s3 = inlined_call_operand.hbm [shape: bf16[32,32], index: 3, kind: input, shape index: {}]
  %s4 = inlined_call_operand.vmem [shape: f32[1,32], index: 4, kind: input, shape index: {}]
  %s5 = inlined_call_operand.hbm [shape: f32[2,8,32], index: 5, kind: output, shape index: {}]
  %s6 = sld [smem:[#allocation0]]
  $region69: #{tpu_custom_call.1} parent=0
    _
  %s8 = ssub.s32 1, %s6
  %s9 = scalar_select 0, %s8, %s6
  $region1: #{tpu_custom_call.1} parent=0
    #allocation4 [shape = 'u8[4096]{0}', space=vmem, size = 0x1000, scoped, tag = 'input window, operand 0']
    #allocation5 [shape = 's32[2]{0}', space=sflag, size = 0x8, scoped, tag = 'scoped memory for tpu_custom_call.1']
    #allocation6 [shape = 's32[2]{0}', space=sflag, size = 0x8, scoped, tag = 'scoped memory for tpu_custom_call.1']
    #allocation7 [shape = 'u8[8192]{0}', space=vmem, size = 0x2000, scoped, tag = 'input window, operand 1, single buffered']
    #allocation8 [shape = 's32[1]{0}', space=sflag, size = 0x4, scoped, tag = 'scoped memory for tpu_custom_call.1']
    #allocation9 [shape = 'u8[8192]{0}', space=vmem, size = 0x2000, scoped, tag = 'input window, operand 3, single buffered']
    #allocation10 [shape = 'u8[8192]{0}', space=vmem, size = 0x2000, scoped, tag = 'output window, operand 0']
    %10 = vsyncpa [#allocation5], 0
    %s11 = scalar_lea.sflag [#allocation5], 1
    %12 = vsyncpa %s11, 0
    %13 = vsyncpa [#allocation8], 0
    %14 = vsyncpa [#allocation6], 0
    %s15 = scalar_lea.sflag [#allocation6], 1
    %16 = vsyncpa %s15, 0
    loop: start=0, step=1, limit=4
    $region2: #{tpu_custom_call.1} parent=1 // loop_pre_header
      _
    $region3: #{tpu_custom_call.1} parent=1 // loop_header
      %s18 = sphi 0, %s22
      %p19 = scmp.ge.s32.totalorder %s18, 4
      %s25 = sphi 0, %s37
      %s26 = sphi 0, %s33
      %s27 = sphi 0, %s25
      %s28 = sphi 0, %s26
      %s29 = sphi 0, %s27
      %s30 = sphi 0, %s28
      %s40 = sphi 0, %s42
      %s43 = sphi 0, %s40
      %s44 = sphi 0, %s43
      %s60 = sphi 0, %s44
      %s64 = sphi 0, %s64
      %s66 = sphi 0, %s64
      %s67 = sphi 0, %s66
      %s81 = sphi 0, %s67
      %s85 = sphi 0, %s85
      %s87 = sphi 0, %s85
      %s88 = sphi 0, %s87
      %s102 = sphi 0, %s88
      %s106 = sphi 0, %s106
      %s108 = sphi 0, %s106
      %s109 = sphi 0, %s108
      %s123 = sphi 0, %s109
      %s127 = sphi 0, %s127
      %s129 = sphi 0, %s127
      %s130 = sphi 0, %s129
      %s144 = sphi 0, %s130
      %s152 = sphi 0, %s154
      %s155 = sphi 0, %s152
      %s156 = sphi 0, %s155
      %s172 = sphi 0, %s156
    $region4: #{tpu_custom_call.1} parent=1 // loop_header_branch
      %21 = sbr.rel (%p19) target = $region8
    $region5: #{tpu_custom_call.1} parent=1 // loop_body
      %s23 = ssub.s32 %s18, 1
      %s24 = ssub.s32 %s18, 2
      %s31 = sadd.s32 1, %s26
      %p32 = scmp.ge.s32.totalorder %s31, 1
      %s33 = scalar_select %p32, 0, %s31
      %s34 = sadd.s32 1, %s25
      %s35 = scalar_select %p32, %s34, %s25
      %p36 = scmp.ge.s32.totalorder %s35, 2
      %s37 = scalar_select %p36, 0, %s35
      %s38 = ssub.s32 %s25, %s37
      %p39 = scmp.eq.s32.totalorder %s38, 0
      %s41 = sadd.s32 %s40, 1
      %s42 = scalar_select %p39, %s40, %s41
      %p45 = pneg %p39
      %p46 = scmp.eq.s32.totalorder %s18, 1
      %p47 = por %p45, %p46
      %p48 = scmp.ne.s32.totalorder %s40, %s43
      %p49 = scmp.eq.s32.totalorder %s18, 0
      %p50 = por %p48, %p49
      %p51 = scmp.ne.s32.totalorder %s40, %s43
      %p52 = scmp.eq.s32.totalorder %s23, 1
      %p53 = por %p51, %p52
      %p54 = scmp.ne.s32.totalorder %s43, %s44
      %p55 = scmp.eq.s32.totalorder %s23, 0
      %p56 = por %p54, %p55
      %p57 = scmp.ne.s32.totalorder %s43, %s44
      %p58 = scmp.eq.s32.totalorder %s24, 1
      %p59 = por %p57, %p58
      %p61 = scmp.ne.s32.totalorder %s44, %s60
      %p62 = scmp.eq.s32.totalorder %s24, 0
      %p63 = por %p61, %p62
      %s65 = sadd.s32 %s64, 1
      %p68 = scmp.eq.s32.totalorder %s18, 1
      %p69 = scmp.ne.s32.totalorder %s64, %s66
      %p70 = scmp.eq.s32.totalorder %s18, 0
      %p71 = por %p69, %p70
      %p72 = scmp.ne.s32.totalorder %s64, %s66
      %p73 = scmp.eq.s32.totalorder %s23, 1
      %p74 = por %p72, %p73
      %p75 = scmp.ne.s32.totalorder %s66, %s67
      %p76 = scmp.eq.s32.totalorder %s23, 0
      %p77 = por %p75, %p76
      %p78 = scmp.ne.s32.totalorder %s66, %s67
      %p79 = scmp.eq.s32.totalorder %s24, 1
      %p80 = por %p78, %p79
      %p82 = scmp.ne.s32.totalorder %s67, %s81
      %p83 = scmp.eq.s32.totalorder %s24, 0
      %p84 = por %p82, %p83
      %s86 = sadd.s32 %s85, 1
      %p89 = scmp.eq.s32.totalorder %s18, 1
      %p90 = scmp.ne.s32.totalorder %s85, %s87
      %p91 = scmp.eq.s32.totalorder %s18, 0
      %p92 = por %p90, %p91
      %p93 = scmp.ne.s32.totalorder %s85, %s87
      %p94 = scmp.eq.s32.totalorder %s23, 1
      %p95 = por %p93, %p94
      %p96 = scmp.ne.s32.totalorder %s87, %s88
      %p97 = scmp.eq.s32.totalorder %s23, 0
      %p98 = por %p96, %p97
      %p99 = scmp.ne.s32.totalorder %s87, %s88
      %p100 = scmp.eq.s32.totalorder %s24, 1
      %p101 = por %p99, %p100
      %p103 = scmp.ne.s32.totalorder %s88, %s102
      %p104 = scmp.eq.s32.totalorder %s24, 0
      %p105 = por %p103, %p104
      %s107 = sadd.s32 %s106, 1
      %p110 = scmp.eq.s32.totalorder %s18, 1
      %p111 = scmp.ne.s32.totalorder %s106, %s108
      %p112 = scmp.eq.s32.totalorder %s18, 0
      %p113 = por %p111, %p112
      %p114 = scmp.ne.s32.totalorder %s106, %s108
      %p115 = scmp.eq.s32.totalorder %s23, 1
      %p116 = por %p114, %p115
      %p117 = scmp.ne.s32.totalorder %s108, %s109
      %p118 = scmp.eq.s32.totalorder %s23, 0
      %p119 = por %p117, %p118
      %p120 = scmp.ne.s32.totalorder %s108, %s109
      %p121 = scmp.eq.s32.totalorder %s24, 1
      %p122 = por %p120, %p121
      %p124 = scmp.ne.s32.totalorder %s109, %s123
      %p125 = scmp.eq.s32.totalorder %s24, 0
      %p126 = por %p124, %p125
      %s128 = sadd.s32 %s127, 1
      %p131 = scmp.eq.s32.totalorder %s18, 1
      %p132 = scmp.ne.s32.totalorder %s127, %s129
      %p133 = scmp.eq.s32.totalorder %s18, 0
      %p134 = por %p132, %p133
      %p135 = scmp.ne.s32.totalorder %s127, %s129
      %p136 = scmp.eq.s32.totalorder %s23, 1
      %p137 = por %p135, %p136
      %p138 = scmp.ne.s32.totalorder %s129, %s130
      %p139 = scmp.eq.s32.totalorder %s23, 0
      %p140 = por %p138, %p139
      %p141 = scmp.ne.s32.totalorder %s129, %s130
      %p142 = scmp.eq.s32.totalorder %s24, 1
      %p143 = por %p141, %p142
      %p145 = scmp.ne.s32.totalorder %s130, %s144
      %p146 = scmp.eq.s32.totalorder %s24, 0
      %p147 = por %p145, %p146
      %s148 = ssub.s32 %s25, %s37
      %s149 = ssub.s32 %s26, %s33
      %s150 = sor.u32 %s148, %s149
      %p151 = scmp.eq.s32.totalorder %s150, 0
      %s153 = sadd.s32 %s152, 1
      %s154 = scalar_select %p151, %s152, %s153
      %p157 = pneg %p151
      %p158 = scmp.eq.s32.totalorder %s18, 1
      %p159 = por %p157, %p158
      %p160 = scmp.ne.s32.totalorder %s152, %s155
      %p161 = scmp.eq.s32.totalorder %s18, 0
      %p162 = por %p160, %p161
      %p163 = scmp.ne.s32.totalorder %s152, %s155
      %p164 = scmp.eq.s32.totalorder %s23, 1
      %p165 = por %p163, %p164
      %p166 = scmp.ne.s32.totalorder %s155, %s156
      %p167 = scmp.eq.s32.totalorder %s23, 0
      %p168 = por %p166, %p167
      %p169 = scmp.ne.s32.totalorder %s155, %s156
      %p170 = scmp.eq.s32.totalorder %s24, 1
      %p171 = por %p169, %p170
      %p173 = scmp.ne.s32.totalorder %s156, %s172
      %p174 = scmp.eq.s32.totalorder %s24, 0
      %p175 = por %p173, %p174
      %p176 = scmp.le.s32.totalorder 1, %s18
      %p177 = scmp.lt.s32.totalorder %s18, 3
      %p178 = pnand %p176, %p177
      %p179 = pneg %p178
      // Predicated region
      $region9: #{tpu_custom_call.1} parent=5 // pred_check
        _
      $region10: #{tpu_custom_call.1} parent=5 // pred_check_branch
        %181 = sbr.rel (%p178) target = $region12
      $region11: #{tpu_custom_call.1} parent=5 // pred_region
        %s182 = ssub.s32 %s18, 1
        // Predicated region
        $region13: #{tpu_custom_call.1} parent=11 // pred_check
          %p183 = pneg %p77
        $region14: #{tpu_custom_call.1} parent=11 // pred_check_branch
          %185 = sbr.rel (%p183) target = $region16
        $region15: #{tpu_custom_call.1} parent=11 // pred_region
          %187 = vsyncadd [#allocation8], 0
          %s188 = sshll.u32 %s1, 4
          %s189 = int_to_ptr.hbm [resolvable:$true] %s188
          %s190 = sshll.u32 [#allocation7], 4
          %s191 = int_to_ptr.vmem [resolvable:$true] %s190
          %196 = dma.hbm_to_vmem [thread:$0]  %s189, 256, %s191, [#allocation8], 64, 64, 4
        $region16: #{tpu_custom_call.1} parent=11 // pred_fallthru
          _
        // Predicated region
        $region17: #{tpu_custom_call.1} parent=11 // pred_check
          %p197 = pneg %p98
        $region18: #{tpu_custom_call.1} parent=11 // pred_check_branch
          %199 = sbr.rel (%p197) target = $region20
        $region19: #{tpu_custom_call.1} parent=11 // pred_region
          _
        $region20: #{tpu_custom_call.1} parent=11 // pred_fallthru
          _
        // Predicated region
        $region21: #{tpu_custom_call.1} parent=11 // pred_check
          %p200 = pneg %p119
        $region22: #{tpu_custom_call.1} parent=11 // pred_check_branch
          %202 = sbr.rel (%p200) target = $region24
        $region23: #{tpu_custom_call.1} parent=11 // pred_region
          %204 = vsyncadd [#allocation8], 0
          %s205 = sshll.u32 %s3, 4
          %s206 = int_to_ptr.hbm [resolvable:$true] %s205
          %s207 = sshll.u32 [#allocation9], 4
          %s208 = int_to_ptr.vmem [resolvable:$true] %s207
          %213 = dma.hbm_to_vmem [thread:$0]  %s206, 256, %s208, [#allocation8], 64, 64, 4
        $region24: #{tpu_custom_call.1} parent=11 // pred_fallthru
          _
        // Predicated region
        $region25: #{tpu_custom_call.1} parent=11 // pred_check
          %p214 = pneg %p140
        $region26: #{tpu_custom_call.1} parent=11 // pred_check_branch
          %216 = sbr.rel (%p214) target = $region28
        $region27: #{tpu_custom_call.1} parent=11 // pred_region
          _
        $region28: #{tpu_custom_call.1} parent=11 // pred_fallthru
          _
      $region12: #{tpu_custom_call.1} parent=5 // pred_fallthru
        _
      %p217 = scmp.lt.s32.totalorder %s18, 2
      // Predicated region
      $region29: #{tpu_custom_call.1} parent=5 // pred_check
        %p218 = pneg %p217
      $region30: #{tpu_custom_call.1} parent=5 // pred_check_branch
        %220 = sbr.rel (%p218) target = $region32
      $region31: #{tpu_custom_call.1} parent=5 // pred_region
        // Predicated region
        $region33: #{tpu_custom_call.1} parent=31 // pred_check
          %p221 = pneg %p50
        $region34: #{tpu_custom_call.1} parent=31 // pred_check_branch
          %223 = sbr.rel (%p221) target = $region36
        $region35: #{tpu_custom_call.1} parent=31 // pred_region
          %s224 = sand.u32 %s40, 1
          %s225 = scalar_lea.sflag [#allocation5], %s224
          %s226 = sand.u32 %s40, 1
          %s227 = smul.addr %s226, 4
          %s228 = scalar_lea.vmem [#allocation4], %s227
          %230 = vsyncadd %s225, 0
          %s231 = smul.addr %s25, 4
          %s232 = scalar_lea.hbm %s0, %s231
          %s234 = sshll.u32 %s232, 4
          %s235 = int_to_ptr.hbm [resolvable:$true] %s234
          %s236 = sshll.u32 %s228, 4
          %s237 = int_to_ptr.vmem [resolvable:$true] %s236
          %239 = dma.hbm_to_vmem [thread:$0]  %s235, 64, %s237, %s225
        $region36: #{tpu_custom_call.1} parent=31 // pred_fallthru
          _
      $region32: #{tpu_custom_call.1} parent=5 // pred_fallthru
        _
      %p240 = scmp.le.s32.totalorder 1, %s18
      %p241 = scmp.lt.s32.totalorder %s18, 3
      %p242 = pnand %p240, %p241
      %p243 = pneg %p242
      // Predicated region
      $region37: #{tpu_custom_call.1} parent=5 // pred_check
        _
      $region38: #{tpu_custom_call.1} parent=5 // pred_check_branch
        %245 = sbr.rel (%p242) target = $region40
      $region39: #{tpu_custom_call.1} parent=5 // pred_region
        %s246 = ssub.s32 %s18, 1
        %s247 = sand.u32 %s43, 1
        %s248 = scalar_lea.sflag [#allocation5], %s247
        %s249 = sand.u32 %s43, 1
        %s250 = smul.addr %s249, 4
        %s251 = scalar_lea.vmem [#allocation4], %s250
        // Predicated region
        $region41: #{tpu_custom_call.1} parent=39 // pred_check
          %p252 = pneg %p56
        $region42: #{tpu_custom_call.1} parent=39 // pred_check_branch
          %254 = sbr.rel (%p252) target = $region44
        $region43: #{tpu_custom_call.1} parent=39 // pred_region
          %256 = dma.done %s248, 64
        $region44: #{tpu_custom_call.1} parent=39 // pred_fallthru
          _
        // Predicated region
        $region45: #{tpu_custom_call.1} parent=39 // pred_check
          %p257 = pneg %p77
        $region46: #{tpu_custom_call.1} parent=39 // pred_check_branch
          %259 = sbr.rel (%p257) target = $region48
        $region47: #{tpu_custom_call.1} parent=39 // pred_region
          %261 = dma.done [#allocation8], 256
        $region48: #{tpu_custom_call.1} parent=39 // pred_fallthru
          _
        // Predicated region
        $region49: #{tpu_custom_call.1} parent=39 // pred_check
          %p262 = pneg %p119
        $region50: #{tpu_custom_call.1} parent=39 // pred_check_branch
          %264 = sbr.rel (%p262) target = $region52
        $region51: #{tpu_custom_call.1} parent=39 // pred_region
          %266 = dma.done [#allocation8], 256
        $region52: #{tpu_custom_call.1} parent=39 // pred_fallthru
          _
        %s267 = sand.u32 %s43, 1
        %s268 = scalar_lea.sflag [#allocation5], %s267
        %s269 = sand.u32 %s43, 1
        %s270 = smul.addr %s269, 4
        %s271 = scalar_lea.vmem [#allocation4], %s270
        %p272 = pneg %p56
        %p273 = pneg %p53
        %p274 = pneg %p77
        %p275 = pneg %p74
        %p276 = pneg %p98
        %p277 = pneg %p95
        %p278 = pneg %p119
        %p279 = pneg %p116
        %p280 = pneg %p140
        %p281 = pneg %p137
        %p282 = pneg %p168
        %p283 = pneg %p165
        %s284 = sand.u32 %s155, 1
        %s285 = scalar_lea.sflag [#allocation6], %s284
        %s286 = sand.u32 %s155, 1
        %s287 = smul.addr %s286, 8
        %s288 = scalar_lea.vmem [#allocation10], %s287
        %p290 = scmp.eq.s32.totalorder %s28, 0
        // Predicated region
        $region53: #{tpu_custom_call.1} parent=39 // pred_check
          %p291 = pneg %p290
        $region54: #{tpu_custom_call.1} parent=39 // pred_check_branch
          %293 = sbr.rel (%p291) target = $region56
        $region55: #{tpu_custom_call.1} parent=39 // pred_region
          %v294 = vld [vmem:[%s251] sm:$0xf]
          %v295 = vld [vmem:[#allocation7] sm:$0xf]
          %v296 = vld [vmem:[#allocation7 + $0x4] sm:$0xf]
          %v297 = vld [vmem:[#allocation7 + $0x8] sm:$0xf]
          %v298 = vld [vmem:[#allocation7 + $0xc] sm:$0xf]
          %v299 = vld [vmem:[%s2] sm:$0x1]
          %v301 = vperm.slane %v299, 0
          %v306 = vunpack.c.l.b16 %v295
          %v307 = vunpack.c.l.b16 %v296
          %v308 = vunpack.c.l.b16 %v297
          %v309 = vunpack.c.l.b16 %v298
          %v310 = vpack.c.b16 %v307, %v306
          %v311 = vpack.c.b16 %v309, %v308
          %312 = vrot.lane.b32.xlu0 %v310, 96
          %v313 = vpop.permute.xlu0 %312
          %314 = vrot.lane.b32.xlu0 %v311, 96
          %v315 = vpop.permute.xlu0 %314
          %318 = vrot.lane.b32.xlu0 %v301, 96
          %v319 = vpop.permute.xlu0 %318
          %vm321 = vcmask 261120
          %v323 = vsel %vm321, %v294, 0
          %325 = vmatpush.bf16.msra.mxu0 0
          %326 = vmatpush.bf16.msra.mxu0 0
          %327 = vmatpush.bf16.msra.mxu0 0
          %328 = vmatpush.bf16.msra.mxu0 0
          %329 = vmatpush.bf16.msra.mxu0 0
          %330 = vmatpush.bf16.msra.mxu0 0
          %331 = vmatpush.bf16.msra.mxu0 %v315
          %332 = vmatpush.bf16.msra.mxu0 %v313
          %333 = vmatmul.bf16.gmra.mxu0 %v323
          %v334 = vpop.f32.mrf.mxu0
          %v335 = vadd.f32 %v319, %v334
          %v336 = vpop.f32.mrf.mxu0
          %337 = vdwg.mxu0
          %v338 = vpack.c.bf16 %v335, %v335
          %vm339 = vcmask 519168
          %340 = vst.msk [vmem:[#allocation2] sm:$0xf] %vm339, %v338
        $region56: #{tpu_custom_call.1} parent=39 // pred_fallthru
          _
        %s341 = smul.u32 %s28, 8
        %s342 = sshra.s32 %s341, 3
        %s343 = sand.u32 %s341, 7
        %s344 = smul.addr %s342, 4
        %s345 = scalar_lea.vmem %s251, %s344 [#allocation4]
        %v346 = vld [vmem:[%s345] sm:$0xf]
        %v347 = vld [vmem:[#allocation7] sm:$0xf]
        %v348 = vld [vmem:[#allocation7 + $0x4] sm:$0xf]
        %v349 = vld [vmem:[#allocation7 + $0x8] sm:$0xf]
        %v350 = vld [vmem:[#allocation7 + $0xc] sm:$0xf]
        %v351 = vld [vmem:[%s2] sm:$0x1]
        %v353 = vperm.slane %v351, 0
        %v359 = vunpack.c.l.b16 %v347
        %v360 = vunpack.c.l.b16 %v348
        %v361 = vunpack.c.l.b16 %v349
        %v362 = vunpack.c.l.b16 %v350
        %v363 = vpack.c.b16 %v360, %v359
        %v364 = vpack.c.b16 %v362, %v361
        %vm367 = vcmask 261120
        %v369 = vsel %vm367, %v346, 0
        %371 = vmatpush.bf16.msra.mxu0 0
        %372 = vmatpush.bf16.msra.mxu0 0
        %373 = vmatpush.bf16.msra.mxu0 0
        %374 = vmatpush.bf16.msra.mxu0 0
        %375 = vmatpush.bf16.msra.mxu0 0
        %376 = vmatpush.bf16.msra.mxu0 0
        %377 = vmatpush.bf16.msra.mxu0 %v364
        %378 = vmatpush.bf16.msra.mxu0 %v363
        %379 = vmatmul.bf16.gmra.mxu0 %v369
        %v380 = vpop.f32.mrf.mxu0
        %v381 = vadd.f32 %v353, %v380
        %v382 = vpop.f32.mrf.mxu0
        %383 = vdwg.mxu0
        %v384 = vmul.f32 %v381, 0.35355338
        %v385 = vpack.c.bf16 %v384, %v384
        %v386 = vld [vmem:[#allocation2] sm:$0xf]
        %vm387 = vcmask 64512
        %v389 = vsel %vm387, %v385, 0
        %v392 = vsel %vm387, %v386, 0
        %394 = vmatpush.bf16.xpose.msra.mxu0 0
        %395 = vmatpush.bf16.xpose.msra.mxu0 0
        %396 = vmatpush.bf16.xpose.msra.mxu0 0
        %397 = vmatpush.bf16.xpose.msra.mxu0 0
        %398 = vmatpush.bf16.xpose.msra.mxu0 0
        %399 = vmatpush.bf16.xpose.msra.mxu0 0
        %400 = vmatpush.bf16.xpose.msra.mxu0 0
        %401 = vmatpush.bf16.xpose.msra.mxu0 %v392
        %402 = vmatmul.bf16.gmra.mxu0 %v389
        %v403 = vpop.f32.mrf.mxu0
        %v404 = vadd.f32 0.0, %v403
        %v405 = vpop.f32.mrf.mxu0
        %406 = vdwg.mxu0
        %v407 = vsel %vm387, %v404, -inf
        %408 = vmax.xlane.f32.xlu0 %v407
        %v409 = vpop.xlane.xlu0 %408
        %v410 = vsub.f32 %v404, %v409
        %v411 = vmul.f32 %v410, 1.442695
        %v412 = vpow.pop %v411
        %v413 = vsel %vm387, %v412, 0.0
        %414 = vadd.xlane.f32.xlu0 %v413
        %v415 = vpop.xlane.xlu0 %414
        %v416 = vpack.c.bf16 %v412, %v412
        %v418 = vunpack.c.l.b16 %v386
        %v419 = vpack.c.b16 %v418, %v418
        %420 = vrot.lane.b32.xlu0 %v419, 96
        %v421 = vpop.permute.xlu0 %420
        %v423 = vsel %vm387, %v416, 0
        %vm425 = vcmask 1043456
        %v427 = vsel %vm425, %v421, 0
        %429 = vmatpush.bf16.msra.mxu0 0
        %430 = vmatpush.bf16.msra.mxu0 0
        %431 = vmatpush.bf16.msra.mxu0 0
        %432 = vmatpush.bf16.msra.mxu0 0
        %433 = vmatpush.bf16.msra.mxu0 0
        %434 = vmatpush.bf16.msra.mxu0 0
        %435 = vmatpush.bf16.msra.mxu0 0
        %436 = vmatpush.bf16.msra.mxu0 %v427
        %437 = vmatmul.bf16.gmra.mxu0 %v423
        %v438 = vpop.f32.mrf.mxu0
        %v439 = vadd.f32 0.0, %v438
        %v440 = vpop.f32.mrf.mxu0
        %441 = vdwg.mxu0
        %v442 = vrcp.pop %v415
        %v443 = vmul.f32 %v439, %v442
        %v444 = vpack.c.bf16 %v443, %v443
        %vm445 = vcmask 60416
        %446 = vst.msk [vmem:[#allocation3] sm:$0xf] %vm445, %v444
        %v448 = vunpack.c.l.b16 %v385
        %v449 = vpack.c.b16 %v448, %v448
        %450 = vrot.lane.b32.xlu0 %v449, 120
        %v451 = vpop.permute.xlu0 %450
        %452 = vrot.lane.b32.xlu0 %v419, 120
        %v453 = vpop.permute.xlu0 %452
        %v455 = vsel %vm387, %v451, 0
        %v458 = vsel %vm387, %v453, 0
        %460 = vmatpush.bf16.xpose.msra.mxu0 0
        %461 = vmatpush.bf16.xpose.msra.mxu0 0
        %462 = vmatpush.bf16.xpose.msra.mxu0 0
        %463 = vmatpush.bf16.xpose.msra.mxu0 0
        %464 = vmatpush.bf16.xpose.msra.mxu0 0
        %465 = vmatpush.bf16.xpose.msra.mxu0 0
        %466 = vmatpush.bf16.xpose.msra.mxu0 0
        %467 = vmatpush.bf16.xpose.msra.mxu0 %v458
        %468 = vmatmul.bf16.gmra.mxu0 %v455
        %v469 = vpop.f32.mrf.mxu0
        %v470 = vadd.f32 0.0, %v469
        %v471 = vpop.f32.mrf.mxu0
        %472 = vdwg.mxu0
        %v473 = vsel %vm387, %v470, -inf
        %474 = vmax.xlane.f32.xlu0 %v473
        %v475 = vpop.xlane.xlu0 %474
        %v476 = vsub.f32 %v470, %v475
        %v477 = vmul.f32 %v476, 1.442695
        %v478 = vpow.pop %v477
        %v479 = vsel %vm387, %v478, 0.0
        %480 = vadd.xlane.f32.xlu0 %v479
        %v481 = vpop.xlane.xlu0 %480
        %v482 = vpack.c.bf16 %v478, %v478
        %483 = vrot.lane.b32.xlu0 %v419, 88
        %v484 = vpop.permute.xlu0 %483
        %v486 = vsel %vm387, %v482, 0
        %v489 = vsel %vm425, %v484, 0
        %491 = vmatpush.bf16.msra.mxu0 0
        %492 = vmatpush.bf16.msra.mxu0 0
        %493 = vmatpush.bf16.msra.mxu0 0
        %494 = vmatpush.bf16.msra.mxu0 0
        %495 = vmatpush.bf16.msra.mxu0 0
        %496 = vmatpush.bf16.msra.mxu0 0
        %497 = vmatpush.bf16.msra.mxu0 0
        %498 = vmatpush.bf16.msra.mxu0 %v489
        %499 = vmatmul.bf16.gmra.mxu0 %v486
        %v500 = vpop.f32.mrf.mxu0
        %v501 = vadd.f32 0.0, %v500
        %v502 = vpop.f32.mrf.mxu0
        %503 = vdwg.mxu0
        %v504 = vrcp.pop %v481
        %v505 = vmul.f32 %v501, %v504
        %v506 = vpack.c.bf16 %v505, %v505
        %508 = vrot.lane.b32.xlu0 %v506, 8
        %v509 = vpop.permute.xlu0 %508
        %vm511 = vcmask 126016
        %512 = vst.msk [vmem:[#allocation3] sm:$0xf] %vm511, %v509
        %513 = vrot.lane.b32.xlu0 %v449, 112
        %v514 = vpop.permute.xlu0 %513
        %515 = vrot.lane.b32.xlu0 %v419, 112
        %v516 = vpop.permute.xlu0 %515
        %v518 = vsel %vm387, %v514, 0
        %v521 = vsel %vm387, %v516, 0
        %523 = vmatpush.bf16.xpose.msra.mxu0 0
        %524 = vmatpush.bf16.xpose.msra.mxu0 0
        %525 = vmatpush.bf16.xpose.msra.mxu0 0
        %526 = vmatpush.bf16.xpose.msra.mxu0 0
        %527 = vmatpush.bf16.xpose.msra.mxu0 0
        %528 = vmatpush.bf16.xpose.msra.mxu0 0
        %529 = vmatpush.bf16.xpose.msra.mxu0 0
        %530 = vmatpush.bf16.xpose.msra.mxu0 %v521
        %531 = vmatmul.bf16.gmra.mxu0 %v518
        %v532 = vpop.f32.mrf.mxu0
        %v533 = vadd.f32 0.0, %v532
        %v534 = vpop.f32.mrf.mxu0
        %535 = vdwg.mxu0
        %v536 = vsel %vm387, %v533, -inf
        %537 = vmax.xlane.f32.xlu0 %v536
        %v538 = vpop.xlane.xlu0 %537
        %v539 = vsub.f32 %v533, %v538
        %v540 = vmul.f32 %v539, 1.442695
        %v541 = vpow.pop %v540
        %v542 = vsel %vm387, %v541, 0.0
        %543 = vadd.xlane.f32.xlu0 %v542
        %v544 = vpop.xlane.xlu0 %543
        %v545 = vpack.c.bf16 %v541, %v541
        %546 = vrot.lane.b32.xlu0 %v419, 80
        %v547 = vpop.permute.xlu0 %546
        %v549 = vsel %vm387, %v545, 0
        %v552 = vsel %vm425, %v547, 0
        %554 = vmatpush.bf16.msra.mxu0 0
        %555 = vmatpush.bf16.msra.mxu0 0
        %556 = vmatpush.bf16.msra.mxu0 0
        %557 = vmatpush.bf16.msra.mxu0 0
        %558 = vmatpush.bf16.msra.mxu0 0
        %559 = vmatpush.bf16.msra.mxu0 0
        %560 = vmatpush.bf16.msra.mxu0 0
        %561 = vmatpush.bf16.msra.mxu0 %v552
        %562 = vmatmul.bf16.gmra.mxu0 %v549
        %v563 = vpop.f32.mrf.mxu0
        %v564 = vadd.f32 0.0, %v563
        %v565 = vpop.f32.mrf.mxu0
        %566 = vdwg.mxu0
        %v567 = vrcp.pop %v544
        %v568 = vmul.f32 %v564, %v567
        %v569 = vpack.c.bf16 %v568, %v568
        %571 = vrot.lane.b32.xlu0 %v569, 16
        %v572 = vpop.permute.xlu0 %571
        %vm574 = vcmask 191616
        %575 = vst.msk [vmem:[#allocation3] sm:$0xf] %vm574, %v572
        %576 = vrot.lane.b32.xlu0 %v449, 104
        %v577 = vpop.permute.xlu0 %576
        %578 = vrot.lane.b32.xlu0 %v419, 104
        %v579 = vpop.permute.xlu0 %578
        %v581 = vsel %vm387, %v577, 0
        %v584 = vsel %vm387, %v579, 0
        %586 = vmatpush.bf16.xpose.msra.mxu0 0
        %587 = vmatpush.bf16.xpose.msra.mxu0 0
        %588 = vmatpush.bf16.xpose.msra.mxu0 0
        %589 = vmatpush.bf16.xpose.msra.mxu0 0
        %590 = vmatpush.bf16.xpose.msra.mxu0 0
        %591 = vmatpush.bf16.xpose.msra.mxu0 0
        %592 = vmatpush.bf16.xpose.msra.mxu0 0
        %593 = vmatpush.bf16.xpose.msra.mxu0 %v584
        %594 = vmatmul.bf16.gmra.mxu0 %v581
        %v595 = vpop.f32.mrf.mxu0
        %v596 = vadd.f32 0.0, %v595
        %v597 = vpop.f32.mrf.mxu0
        %598 = vdwg.mxu0
        %v599 = vsel %vm387, %v596, -inf
        %600 = vmax.xlane.f32.xlu0 %v599
        %v601 = vpop.xlane.xlu0 %600
        %v602 = vsub.f32 %v596, %v601
        %v603 = vmul.f32 %v602, 1.442695
        %v604 = vpow.pop %v603
        %v605 = vsel %vm387, %v604, 0.0
        %606 = vadd.xlane.f32.xlu0 %v605
        %v607 = vpop.xlane.xlu0 %606
        %v608 = vpack.c.bf16 %v604, %v604
        %609 = vrot.lane.b32.xlu0 %v419, 72
        %v610 = vpop.permute.xlu0 %609
        %v612 = vsel %vm387, %v608, 0
        %v615 = vsel %vm425, %v610, 0
        %617 = vmatpush.bf16.msra.mxu0 0
        %618 = vmatpush.bf16.msra.mxu0 0
        %619 = vmatpush.bf16.msra.mxu0 0
        %620 = vmatpush.bf16.msra.mxu0 0
        %621 = vmatpush.bf16.msra.mxu0 0
        %622 = vmatpush.bf16.msra.mxu0 0
        %623 = vmatpush.bf16.msra.mxu0 0
        %624 = vmatpush.bf16.msra.mxu0 %v615
        %625 = vmatmul.bf16.gmra.mxu0 %v612
        %v626 = vpop.f32.mrf.mxu0
        %v627 = vadd.f32 0.0, %v626
        %v628 = vpop.f32.mrf.mxu0
        %629 = vdwg.mxu0
        %v630 = vrcp.pop %v607
        %v631 = vmul.f32 %v627, %v630
        %v632 = vpack.c.bf16 %v631, %v631
        %634 = vrot.lane.b32.xlu0 %v632, 24
        %v635 = vpop.permute.xlu0 %634
        %vm637 = vcmask 257216
        %638 = vst.msk [vmem:[#allocation3] sm:$0xf] %vm637, %v635
        %v639 = vld [vmem:[#allocation3] sm:$0xf]
        %v640 = vld [vmem:[#allocation9] sm:$0xf]
        %v641 = vld [vmem:[#allocation9 + $0x4] sm:$0xf]
        %v642 = vld [vmem:[#allocation9 + $0x8] sm:$0xf]
        %v643 = vld [vmem:[#allocation9 + $0xc] sm:$0xf]
        %v644 = vld [vmem:[%s4] sm:$0x1]
        %v646 = vperm.slane %v644, 0
        %v652 = vunpack.c.l.b16 %v640
        %v653 = vunpack.c.l.b16 %v641
        %v654 = vunpack.c.l.b16 %v642
        %v655 = vunpack.c.l.b16 %v643
        %v656 = vpack.c.b16 %v653, %v652
        %v657 = vpack.c.b16 %v655, %v654
        %v661 = vsel %vm367, %v639, 0
        %663 = vmatpush.bf16.msra.mxu0 0
        %664 = vmatpush.bf16.msra.mxu0 0
        %665 = vmatpush.bf16.msra.mxu0 0
        %666 = vmatpush.bf16.msra.mxu0 0
        %667 = vmatpush.bf16.msra.mxu0 0
        %668 = vmatpush.bf16.msra.mxu0 0
        %669 = vmatpush.bf16.msra.mxu0 %v657
        %670 = vmatpush.bf16.msra.mxu0 %v656
        %671 = vmatmul.bf16.gmra.mxu0 %v661
        %v672 = vpop.f32.mrf.mxu0
        %v673 = vadd.f32 %v646, %v672
        %v674 = vpop.f32.mrf.mxu0
        %675 = vdwg.mxu0
        %676 = vst.msk [vmem:[%s288] sm:$0xff] %vm367, %v673
        %s677 = sand.u32 %s155, 1
        %s678 = scalar_lea.sflag [#allocation6], %s677
        %s679 = sand.u32 %s155, 1
        %s680 = smul.addr %s679, 8
        %s681 = scalar_lea.vmem [#allocation10], %s680
        // Predicated region
        $region57: #{tpu_custom_call.1} parent=39 // pred_check
          %p682 = pneg %p165
        $region58: #{tpu_custom_call.1} parent=39 // pred_check_branch
          %684 = sbr.rel (%p682) target = $region60
        $region59: #{tpu_custom_call.1} parent=39 // pred_region
          %686 = vsyncadd %s678, 0
          %s687 = sadd.s32 %s28, %s27
          %s688 = smul.addr %s687, 8
          %s689 = scalar_lea.hbm %s5, %s688
          %s691 = sshll.u32 %s681, 4
          %s692 = int_to_ptr.vmem [resolvable:$true] %s691
          %s693 = sshll.u32 %s689, 4
          %s694 = int_to_ptr.hbm [resolvable:$true] %s693
          %696 = dma.vmem_to_hbm [thread:$0]  %s692, 128, %s694, %s678
        $region60: #{tpu_custom_call.1} parent=39 // pred_fallthru
          _
      $region40: #{tpu_custom_call.1} parent=5 // pred_fallthru
        _
      %p697 = scmp.le.s32.totalorder 2, %s18
      // Predicated region
      $region61: #{tpu_custom_call.1} parent=5 // pred_check
        %p698 = pneg %p697
      $region62: #{tpu_custom_call.1} parent=5 // pred_check_branch
        %700 = sbr.rel (%p698) target = $region64
      $region63: #{tpu_custom_call.1} parent=5 // pred_region
        %s701 = ssub.s32 %s18, 2
        // Predicated region
        $region65: #{tpu_custom_call.1} parent=63 // pred_check
          %p702 = pneg %p171
        $region66: #{tpu_custom_call.1} parent=63 // pred_check_branch
          %704 = sbr.rel (%p702) target = $region68
        $region67: #{tpu_custom_call.1} parent=63 // pred_region
          %s705 = sand.u32 %s156, 1
          %s706 = scalar_lea.sflag [#allocation6], %s705
          %s707 = sand.u32 %s156, 1
          %s708 = smul.addr %s707, 8
          %s709 = scalar_lea.vmem [#allocation10], %s708
          %711 = dma.done %s706, 128
        $region68: #{tpu_custom_call.1} parent=63 // pred_fallthru
          _
      $region64: #{tpu_custom_call.1} parent=5 // pred_fallthru
        _
    $region6: #{tpu_custom_call.1} parent=1 // loop_footer
      %s22 = sadd.s32 1, %s18
    $region7: #{tpu_custom_call.1} parent=1 // loop_footer_branch
      %17 = sbr.rel target = $region3
    $region8: #{tpu_custom_call.1} parent=1 // loop_exit
      _
    %712 = vsyncpa [#allocation5], 1
    %s713 = scalar_lea.sflag [#allocation5], 1
    %714 = vsyncpa %s713, 1
    %715 = vsyncpa [#allocation8], 1
    %716 = vsyncpa [#allocation6], 1
    %s717 = scalar_lea.sflag [#allocation6], 1
    %718 = vsyncpa %s717, 1

</llo_original>
